<compile_context>
chip_gen: v6e
topology: v6e:2x2x1
jax: 0.10.0
libtpu: 0.0.40
codegen_flags: <defaults>
</compile_context>

<pallas_src>
import jax
import jax.numpy as jnp
from jax.experimental import pallas as pl
from jax.experimental.pallas import tpu as pltpu


def _mlp_kernel(x_ref, w1_ref, w2_ref, o_ref, acc_ref):
    """One (batch-tile, 4H-slice) step of fused fc2(fc1(x)).

    x_ref  : (TM, H)   activation tile
    w1_ref : (H, TK)   fc1 weight slice, math layout (x @ w1 -> hidden)
    w2_ref : (TK, H)   fc2 weight slice, math layout (hidden @ w2 -> out)
    o_ref  : (TM, H)   output tile (same block across all K steps)
    acc_ref: (TM, H)   f32 accumulator scratch
    """
    k = pl.program_id(1)

    @pl.when(k == 0)
    def _init():
        acc_ref[...] = jnp.zeros_like(acc_ref)

    # fc1 slice: (TM, H) @ (H, TK) -> (TM, TK). Contraction is on the RHS
    # sublane axis (math layout), so the MXU is fed without an XLU transpose.
    # On the bf16 path the intermediate is produced in bf16 directly: the MXU
    # accumulates in f32 internally and rounds once, so numerics match the old
    # f32-then-cast path while halving vreg pressure.
    h_dtype = w1_ref.dtype if w1_ref.dtype == jnp.bfloat16 else jnp.float32
    h = jnp.dot(x_ref[...], w1_ref[...], preferred_element_type=h_dtype)

    # fc2 slice: (TM, TK) @ (TK, H), accumulated in f32 across the 4H axis.
    acc_ref[...] += jnp.dot(h, w2_ref[...], preferred_element_type=jnp.float32)

    @pl.when(k == pl.num_programs(1) - 1)
    def _finalize():
        o_ref[...] = acc_ref[...].astype(o_ref.dtype)


def _working_set_bytes(tm, h, tk, itemsize):
    # Double-buffered x / w1 / w2 / out tiles + resident f32 accumulator.
    return 2 * (tm * h + h * tk + tk * h + tm * h) * itemsize + tm * h * 4


def _vmem_capacity_bytes():
    """Per-TensorCore VMEM capacity; conservative 64 MiB (v7x) fallback."""
    try:
        info = pltpu.get_tpu_info()
        cap = getattr(info, "vmem_capacity_bytes", None)
        if cap:
            return int(cap)
    except Exception:
        pass
    return 64 * 1024 * 1024


def _choose_tiles(B, H, H4, itemsize, budget):
    """Pick (tm, tk): tm = batch tile, tk = slice of the 4H reduction axis."""
    # Prefer 256-aligned tiles (v6e/v7x MXU width); largest tm first so weights
    # are re-streamed from HBM as few times as possible (key on v5e bandwidth).
    tm_cands = [c for c in (512, 256, 128, 64, 32, 16, 8) if B % c == 0] or [B]
    tk_cands = [c for c in (4096, 2048, 1024, 512, 256, 128) if H4 % c == 0] or [H4]

    n_tm = len(tm_cands)
    for ti, tm in enumerate(tm_cands):
        # Keep >= 2 batch tiles when the next-smaller tile still fills the MXU
        # (>= 256 rows), so both v7x TensorCores get work under
        # dimension_semantics=("parallel", ...). Harmless on 1-TC chips.
        if (B // tm == 1 and ti + 1 < n_tm
                and tm_cands[ti + 1] >= 256 and B // tm_cands[ti + 1] >= 2):
            continue
        for tk in tk_cands:
            if _working_set_bytes(tm, H, tk, itemsize) <= budget:
                return tm, tk
    # Graceful degradation: smallest tm + smallest tk (full-dim blocks are legal).
    return tm_cands[-1], tk_cands[-1]


def mlp_forward(x, w1, w2):
    """Fused fc2(fc1(x)), bias-free.

    x  : (B, H)
    w1 : (4H, H)  -- fc1.weight, PyTorch layout
    w2 : (H, 4H)  -- fc2.weight, PyTorch layout
    """
    B, H = x.shape
    H4 = w1.shape[0]
    assert w1.shape == (H4, H), w1.shape
    assert w2.shape == (H, H4), w2.shape

    # One-time transpose to math layout, outside the kernel (XLA amortizes it);
    # both in-kernel matmuls then contract on the RHS sublane axis -> no per-tile
    # XLU transposes on the MXU path.
    w1m = w1.T  # (H, 4H)
    w2m = w2.T  # (4H, H)

    itemsize = max(jnp.dtype(x.dtype).itemsize, jnp.dtype(w1.dtype).itemsize)
    cap = _vmem_capacity_bytes()
    budget = int(0.70 * cap)  # tile working-set budget; headroom for Mosaic scratch
    tm, tk = _choose_tiles(B, H, H4, itemsize, budget)
    grid = (B // tm, H4 // tk)

    working = _working_set_bytes(tm, H, tk, itemsize)
    vmem_limit = int(min(0.85 * cap, max(32 * 1024 * 1024, 2 * working)))
    vmem_limit = max(vmem_limit, working + 8 * 1024 * 1024)  # never below working set
    vmem_limit = int(min(vmem_limit, cap))

    x_bytes = x.size * jnp.dtype(x.dtype).itemsize
    w_bytes = (w1.size + w2.size) * jnp.dtype(w1.dtype).itemsize
    o_bytes = B * H * jnp.dtype(x.dtype).itemsize
    cost = pl.CostEstimate(
        flops=2 * 2 * B * H4 * H,            # two matmuls, 2*M*K*N each
        transcendentals=0,
        bytes_accessed=int(x_bytes + (B // tm) * w_bytes + o_bytes),
    )

    return pl.pallas_call(
        _mlp_kernel,
        out_shape=jax.ShapeDtypeStruct((B, H), x.dtype),
        grid_spec=pltpu.PrefetchScalarGridSpec(
            num_scalar_prefetch=0,
            grid=grid,
            in_specs=[
                pl.BlockSpec((tm, H), lambda i, k: (i, 0)),   # x tile
                pl.BlockSpec((H, tk), lambda i, k: (0, k)),   # fc1 weight slice (math layout)
                pl.BlockSpec((tk, H), lambda i, k: (k, 0)),   # fc2 weight slice (math layout)
            ],
            out_specs=pl.BlockSpec((tm, H), lambda i, k: (i, 0)),
            scratch_shapes=[pltpu.VMEM((tm, H), jnp.float32)],
        ),
        compiler_params=pltpu.CompilerParams(
            dimension_semantics=("parallel", "arbitrary"),
            vmem_limit_bytes=vmem_limit,
        ),
        cost_estimate=cost,
    )(x, w1m, w2m)


if __name__ == "__main__":
    hidden_size = 32
    batch = 8

    key = jax.random.PRNGKey(0)
    kx, k1, k2 = jax.random.split(key, 3)

    # Deterministic init mimicking nn.Linear default: U(-1/sqrt(in), 1/sqrt(in))
    bound1 = 1.0 / jnp.sqrt(jnp.float32(hidden_size))
    bound2 = 1.0 / jnp.sqrt(jnp.float32(hidden_size * 4))
    w1 = jax.random.uniform(k1, (hidden_size * 4, hidden_size),
                            dtype=jnp.float32, minval=-bound1, maxval=bound1)
    w2 = jax.random.uniform(k2, (hidden_size, hidden_size * 4),
                            dtype=jnp.float32, minval=-bound2, maxval=bound2)
    x = jax.random.normal(kx, (batch, hidden_size), dtype=jnp.float32)

    # Pure-JAX reference: fc2(fc1(x)) with PyTorch weight layout.
    ref = (x @ w1.T) @ w2.T

    # f32 path.
    out = jax.block_until_ready(mlp_forward(x, w1, w2))
    assert out.shape == (batch, hidden_size)
    assert jnp.allclose(out, ref, atol=1e-4, rtol=1e-4), "f32 mismatch vs reference"

    # bf16 weights/activations (MXU fast path), f32 accumulation inside kernel.
    out_bf16 = jax.block_until_ready(
        mlp_forward(x.astype(jnp.bfloat16),
                    w1.astype(jnp.bfloat16),
                    w2.astype(jnp.bfloat16)))
    assert out_bf16.dtype == jnp.bfloat16
    assert jnp.allclose(out_bf16.astype(jnp.float32), ref, atol=5e-2, rtol=5e-2), \
        "bf16 mismatch vs reference"

    print("KERNEL_OK")
</pallas_src>

<mosaic_0001>
module attributes {stable_mosaic.version = 11 : i64} {
  func.func @_mlp_kernel(%arg0: i32, %arg1: i32, %arg2: memref<8x32xf32, #tpu.memory_space<vmem>>, %arg3: memref<32x128xf32, #tpu.memory_space<vmem>>, %arg4: memref<128x32xf32, #tpu.memory_space<vmem>>, %arg5: memref<8x32xf32, #tpu.memory_space<vmem>>, %arg6: memref<8x32xf32, #tpu.memory_space<vmem>>) attributes {dimension_semantics = [#tpu.dimension_semantics<parallel>, #tpu.dimension_semantics<arbitrary>], iteration_bounds = array<i64: 1, 1>, scalar_prefetch = 0 : i64, scratch_operands = 1 : i64, tpu.core_type = #tpu.core_type<tc>, window_params = [{transform_indices = @transform_0, window_bounds = array<i64: 8, 32>}, {transform_indices = @transform_1, window_bounds = array<i64: 32, 128>}, {transform_indices = @transform_2, window_bounds = array<i64: 128, 32>}, {transform_indices = @transform_3, window_bounds = array<i64: 8, 32>}]} {
    %c0_i32 = arith.constant 0 : i32
    %0 = arith.cmpi eq, %arg1, %c0_i32 : i32
    %1 = arith.extui %0 : i1 to i32
    %c0_i32_0 = arith.constant 0 : i32
    %2 = arith.cmpi ne, %1, %c0_i32_0 : i32
    scf.if %2 {
      %cst_13 = arith.constant 0.000000e+00 : f32
      %14 = vector.broadcast %cst_13 : f32 to vector<8x32xf32>
      %c0_14 = arith.constant 0 : index
      %c0_15 = arith.constant 0 : index
      %15 = vector.load %arg6[%c0_14, %c0_15] : memref<8x32xf32, #tpu.memory_space<vmem>>, vector<8x32xf32>
      tpu.vector_store %arg6[%c0_14, %c0_15], %14 {strides = array<i32>} : memref<8x32xf32, #tpu.memory_space<vmem>>, vector<8x32xf32>,
    } else {
    }
    %c0 = arith.constant 0 : index
    %c0_1 = arith.constant 0 : index
    %3 = vector.load %arg2[%c0, %c0_1] : memref<8x32xf32, #tpu.memory_space<vmem>>, vector<8x32xf32>
    %c0_2 = arith.constant 0 : index
    %c0_3 = arith.constant 0 : index
    %4 = vector.load %arg3[%c0_2, %c0_3] : memref<32x128xf32, #tpu.memory_space<vmem>>, vector<32x128xf32>
    %cst = arith.constant dense<0.000000e+00> : vector<8x128xf32>
    %5 = tpu.matmul %3, %4, %cst {dimension_numbers = #tpu.dot_dimension_numbers<[1], [0], [0], [1], [0, 0, 1, 1], [], []>} : vector<8x32xf32>, vector<32x128xf32>, vector<8x128xf32> -> vector<8x128xf32>
    %c0_4 = arith.constant 0 : index
    %c0_5 = arith.constant 0 : index
    %6 = vector.load %arg6[%c0_4, %c0_5] : memref<8x32xf32, #tpu.memory_space<vmem>>, vector<8x32xf32>
    %c0_6 = arith.constant 0 : index
    %c0_7 = arith.constant 0 : index
    %7 = vector.load %arg4[%c0_6, %c0_7] : memref<128x32xf32, #tpu.memory_space<vmem>>, vector<128x32xf32>
    %cst_8 = arith.constant dense<0.000000e+00> : vector<8x32xf32>
    %8 = tpu.matmul %5, %7, %cst_8 {dimension_numbers = #tpu.dot_dimension_numbers<[1], [0], [0], [1], [0, 0, 1, 1], [], []>} : vector<8x128xf32>, vector<128x32xf32>, vector<8x32xf32> -> vector<8x32xf32>
    %9 = arith.addf %6, %8 : vector<8x32xf32>
    %c0_9 = arith.constant 0 : index
    %c0_10 = arith.constant 0 : index
    %10 = vector.load %arg6[%c0_9, %c0_10] : memref<8x32xf32, #tpu.memory_space<vmem>>, vector<8x32xf32>
    tpu.vector_store %arg6[%c0_9, %c0_10], %9 {strides = array<i32>} : memref<8x32xf32, #tpu.memory_space<vmem>>, vector<8x32xf32>,
    %c0_i32_11 = arith.constant 0 : i32
    %11 = arith.cmpi eq, %arg1, %c0_i32_11 : i32
    %12 = arith.extui %11 : i1 to i32
    %c0_i32_12 = arith.constant 0 : i32
    %13 = arith.cmpi ne, %12, %c0_i32_12 : i32
    scf.if %13 {
      %c0_13 = arith.constant 0 : index
      %c0_14 = arith.constant 0 : index
      %14 = vector.load %arg6[%c0_13, %c0_14] : memref<8x32xf32, #tpu.memory_space<vmem>>, vector<8x32xf32>
      %c0_15 = arith.constant 0 : index
      %c0_16 = arith.constant 0 : index
      %15 = vector.load %arg5[%c0_15, %c0_16] : memref<8x32xf32, #tpu.memory_space<vmem>>, vector<8x32xf32>
      tpu.vector_store %arg5[%c0_15, %c0_16], %14 {strides = array<i32>} : memref<8x32xf32, #tpu.memory_space<vmem>>, vector<8x32xf32>,
    } else {
    }
    return
  }
  func.func @transform_0(%arg0: i32, %arg1: i32) -> (i32, i32) {
    %c0_i32 = arith.constant 0 : i32
    %c0_i32_0 = arith.constant 0 : i32
    return %arg0, %c0_i32 : i32, i32
  }
  func.func @transform_1(%arg0: i32, %arg1: i32) -> (i32, i32) {
    %c0_i32 = arith.constant 0 : i32
    %c0_i32_0 = arith.constant 0 : i32
    return %c0_i32, %arg1 : i32, i32
  }
  func.func @transform_2(%arg0: i32, %arg1: i32) -> (i32, i32) {
    %c0_i32 = arith.constant 0 : i32
    %c0_i32_0 = arith.constant 0 : i32
    return %arg1, %c0_i32 : i32, i32
  }
  func.func @transform_3(%arg0: i32, %arg1: i32) -> (i32, i32) {
    %c0_i32 = arith.constant 0 : i32
    %c0_i32_0 = arith.constant 0 : i32
    return %arg0, %c0_i32 : i32, i32
  }
}

</mosaic_0001>

<llo_original>
// kernel: tpu_custom_call.1
$region0: #{tpu_custom_call.1}
  #allocation0 [shape = 'u32[]', space=smem, size = 0x4, offset = 0x4, fixed_abs, tag = 'smem constant byte address 0x4 - core index']
  #allocation1 [shape = 'u32[144,128]{1,0:T(1,128)}', space=vmem, size = 0x12000, scoped, tag = 'internal scratch']
  #allocation2 [shape = 'f32[8,32]{1,0:T(8,128)}', space=vmem, size = 0x1000, scoped, tag = 'scratch operand']
  %s0 = inlined_call_operand.vmem [shape: f32[8,32], index: 0, kind: input, shape index: {}]
  %s1 = inlined_call_operand.vmem [shape: f32[32,128], index: 1, kind: input, shape index: {}]
  %s2 = inlined_call_operand.vmem [shape: f32[128,32], index: 2, kind: input, shape index: {}]
  %s3 = inlined_call_operand.hbm [shape: f32[8,32], index: 3, kind: output, shape index: {}]
  %s4 = sld [smem:[#allocation0]]
  $region30: #{tpu_custom_call.1} parent=0
    _
  %s6 = ssub.s32 1, %s4
  %s7 = scalar_select 0, %s6, %s4
  $region1: #{tpu_custom_call.1} parent=0
    #allocation3 [shape = 'u8[4096]{0}', space=vmem, size = 0x1000, scoped, tag = 'output window, operand 0, single buffered']
    #allocation4 [shape = 's32[1]{0}', space=sflag, size = 0x4, scoped, tag = 'scoped memory for tpu_custom_call.1']
    %8 = vsyncpa [#allocation4], 0
    // Predicated region
    $region2: #{tpu_custom_call.1} parent=1 // pred_check
      _
    $region3: #{tpu_custom_call.1} parent=1 // pred_check_branch
      %10 = sbr.rel (0) target = $region5
    $region4: #{tpu_custom_call.1} parent=1 // pred_region
      _
    $region5: #{tpu_custom_call.1} parent=1 // pred_fallthru
      _
    // Predicated region
    $region6: #{tpu_custom_call.1} parent=1 // pred_check
      _
    $region7: #{tpu_custom_call.1} parent=1 // pred_check_branch
      %12 = sbr.rel (0) target = $region9
    $region8: #{tpu_custom_call.1} parent=1 // pred_region
      _
    $region9: #{tpu_custom_call.1} parent=1 // pred_fallthru
      _
    // Predicated region
    $region10: #{tpu_custom_call.1} parent=1 // pred_check
      _
    $region11: #{tpu_custom_call.1} parent=1 // pred_check_branch
      %14 = sbr.rel (0) target = $region13
    $region12: #{tpu_custom_call.1} parent=1 // pred_region
      _
    $region13: #{tpu_custom_call.1} parent=1 // pred_fallthru
      _
    %p15 = scmp.eq.s32.totalorder 0, 0
    // Predicated region
    $region14: #{tpu_custom_call.1} parent=1 // pred_check
      %p16 = pneg %p15
    $region15: #{tpu_custom_call.1} parent=1 // pred_check_branch
      %18 = sbr.rel (%p16) target = $region17
    $region16: #{tpu_custom_call.1} parent=1 // pred_region
      %vm19 = vcmask 261120
      %20 = vst.msk [vmem:[#allocation2] sm:$0xff] %vm19, 0.0
    $region17: #{tpu_custom_call.1} parent=1 // pred_fallthru
      _
    %v21 = vld [vmem:[%s0] sm:$0xff]
    %v22 = vld [vmem:[%s1] sm:$0xff]
    %v23 = vld [vmem:[%s1 + $0x8] sm:$0xff]
    %v24 = vld [vmem:[%s1 + $0x10] sm:$0xff]
    %v25 = vld [vmem:[%s1 + $0x18] sm:$0xff]
    %vm26 = vcmask 261120
    %v28 = vsel %vm26, %v21, 0
    %30 = vmatprep.subr.mxu0 0.0
    %31 = vmatpush1.msra.mxu0 0.0
    %32 = vmatprep.subr.mxu0 0.0
    %33 = vmatpush1.msra.mxu0 0.0
    %34 = vmatprep.subr.mxu0 0.0
    %35 = vmatpush1.msra.mxu0 0.0
    %36 = vmatprep.subr.mxu0 0.0
    %37 = vmatpush1.msra.mxu0 0.0
    %38 = vmatprep.subr.mxu0 0.0
    %39 = vmatpush1.msra.mxu0 0.0
    %40 = vmatprep.subr.mxu0 0.0
    %41 = vmatpush1.msra.mxu0 0.0
    %42 = vmatprep.subr.mxu0 0.0
    %43 = vmatpush1.msra.mxu0 0.0
    %44 = vmatprep.subr.mxu0 0.0
    %45 = vmatpush1.msra.mxu0 0.0
    %46 = vmatprep.subr.mxu0 0.0
    %47 = vmatpush1.msra.mxu0 0.0
    %48 = vmatprep.subr.mxu0 0.0
    %49 = vmatpush1.msra.mxu0 0.0
    %50 = vmatprep.subr.mxu0 0.0
    %51 = vmatpush1.msra.mxu0 0.0
    %52 = vmatprep.subr.mxu0 0.0
    %53 = vmatpush1.msra.mxu0 0.0
    %54 = vmatprep.subr.mxu0 0.0
    %55 = vmatpush1.msra.mxu0 %v25
    %56 = vmatprep.subr.mxu0 0.0
    %57 = vmatpush1.msra.mxu0 %v24
    %58 = vmatprep.subr.mxu0 0.0
    %59 = vmatpush1.msra.mxu0 %v23
    %60 = vmatprep.subr.mxu0 0.0
    %61 = vmatpush1.msra.mxu0 %v22
    %62 = vmatprep.subr.mxu0 0.0
    %63 = vmatpush2.msra.mxu0 0.0
    %64 = vmatprep.subr.mxu0 0.0
    %65 = vmatpush2.msra.mxu0 0.0
    %66 = vmatprep.subr.mxu0 0.0
    %67 = vmatpush2.msra.mxu0 0.0
    %68 = vmatprep.subr.mxu0 0.0
    %69 = vmatpush2.msra.mxu0 0.0
    %70 = vmatprep.subr.mxu0 0.0
    %71 = vmatpush2.msra.mxu0 0.0
    %72 = vmatprep.subr.mxu0 0.0
    %73 = vmatpush2.msra.mxu0 0.0
    %74 = vmatprep.subr.mxu0 0.0
    %75 = vmatpush2.msra.mxu0 0.0
    %76 = vmatprep.subr.mxu0 0.0
    %77 = vmatpush2.msra.mxu0 0.0
    %78 = vmatprep.subr.mxu0 0.0
    %79 = vmatpush2.msra.mxu0 0.0
    %80 = vmatprep.subr.mxu0 0.0
    %81 = vmatpush2.msra.mxu0 0.0
    %82 = vmatprep.subr.mxu0 0.0
    %83 = vmatpush2.msra.mxu0 0.0
    %84 = vmatprep.subr.mxu0 0.0
    %85 = vmatpush2.msra.mxu0 0.0
    %86 = vmatprep.subr.mxu0 0.0
    %87 = vmatpush2.msra.mxu0 0.0
    %88 = vmatprep.subr.mxu0 0.0
    %89 = vmatpush2.msra.mxu0 0.0
    %90 = vmatprep.subr.mxu0 0.0
    %91 = vmatpush2.msra.mxu0 0.0
    %92 = vmatprep.subr.mxu0 0.0
    %93 = vmatpush2.msra.mxu0 0.0
    %94 = vmatprep.mubr.f32.mxu0 0.0
    %95 = vmatmul.mubr.f32.gmra.mxu0 %v28
    %v96 = vpop.f32.mrf.mxu0
    %v97 = vadd.f32 0.0, %v96
    %v98 = vpop.f32.mrf.mxu0
    %99 = vdwg.mxu0
    %v100 = vld [vmem:[#allocation2] sm:$0xff]
    %v101 = vld [vmem:[%s2] sm:$0xff]
    %v102 = vld [vmem:[%s2 + $0x8] sm:$0xff]
    %v103 = vld [vmem:[%s2 + $0x10] sm:$0xff]
    %v104 = vld [vmem:[%s2 + $0x18] sm:$0xff]
    %v105 = vld [vmem:[%s2 + $0x20] sm:$0xff]
    %v106 = vld [vmem:[%s2 + $0x28] sm:$0xff]
    %v107 = vld [vmem:[%s2 + $0x30] sm:$0xff]
    %v108 = vld [vmem:[%s2 + $0x38] sm:$0xff]
    %v109 = vld [vmem:[%s2 + $0x40] sm:$0xff]
    %v110 = vld [vmem:[%s2 + $0x48] sm:$0xff]
    %v111 = vld [vmem:[%s2 + $0x50] sm:$0xff]
    %v112 = vld [vmem:[%s2 + $0x58] sm:$0xff]
    %v113 = vld [vmem:[%s2 + $0x60] sm:$0xff]
    %v114 = vld [vmem:[%s2 + $0x68] sm:$0xff]
    %v115 = vld [vmem:[%s2 + $0x70] sm:$0xff]
    %v116 = vld [vmem:[%s2 + $0x78] sm:$0xff]
    %117 = vmatprep.subr.mxu0 0.0
    %118 = vmatpush1.msra.mxu0 %v116
    %119 = vmatprep.subr.mxu0 0.0
    %120 = vmatpush1.msra.mxu0 %v115
    %121 = vmatprep.subr.mxu0 0.0
    %122 = vmatpush1.msra.mxu0 %v114
    %123 = vmatprep.subr.mxu0 0.0
    %124 = vmatpush1.msra.mxu0 %v113
    %125 = vmatprep.subr.mxu0 0.0
    %126 = vmatpush1.msra.mxu0 %v112
    %127 = vmatprep.subr.mxu0 0.0
    %128 = vmatpush1.msra.mxu0 %v111
    %129 = vmatprep.subr.mxu0 0.0
    %130 = vmatpush1.msra.mxu0 %v110
    %131 = vmatprep.subr.mxu0 0.0
    %132 = vmatpush1.msra.mxu0 %v109
    %133 = vmatprep.subr.mxu0 0.0
    %134 = vmatpush1.msra.mxu0 %v108
    %135 = vmatprep.subr.mxu0 0.0
    %136 = vmatpush1.msra.mxu0 %v107
    %137 = vmatprep.subr.mxu0 0.0
    %138 = vmatpush1.msra.mxu0 %v106
    %139 = vmatprep.subr.mxu0 0.0
    %140 = vmatpush1.msra.mxu0 %v105
    %141 = vmatprep.subr.mxu0 0.0
    %142 = vmatpush1.msra.mxu0 %v104
    %143 = vmatprep.subr.mxu0 0.0
    %144 = vmatpush1.msra.mxu0 %v103
    %145 = vmatprep.subr.mxu0 0.0
    %146 = vmatpush1.msra.mxu0 %v102
    %147 = vmatprep.subr.mxu0 0.0
    %148 = vmatpush1.msra.mxu0 %v101
    %149 = vmatprep.subr.mxu0 0.0
    %150 = vmatpush2.msra.mxu0 0.0
    %151 = vmatprep.subr.mxu0 0.0
    %152 = vmatpush2.msra.mxu0 0.0
    %153 = vmatprep.subr.mxu0 0.0
    %154 = vmatpush2.msra.mxu0 0.0
    %155 = vmatprep.subr.mxu0 0.0
    %156 = vmatpush2.msra.mxu0 0.0
    %157 = vmatprep.subr.mxu0 0.0
    %158 = vmatpush2.msra.mxu0 0.0
    %159 = vmatprep.subr.mxu0 0.0
    %160 = vmatpush2.msra.mxu0 0.0
    %161 = vmatprep.subr.mxu0 0.0
    %162 = vmatpush2.msra.mxu0 0.0
    %163 = vmatprep.subr.mxu0 0.0
    %164 = vmatpush2.msra.mxu0 0.0
    %165 = vmatprep.subr.mxu0 0.0
    %166 = vmatpush2.msra.mxu0 0.0
    %167 = vmatprep.subr.mxu0 0.0
    %168 = vmatpush2.msra.mxu0 0.0
    %169 = vmatprep.subr.mxu0 0.0
    %170 = vmatpush2.msra.mxu0 0.0
    %171 = vmatprep.subr.mxu0 0.0
    %172 = vmatpush2.msra.mxu0 0.0
    %173 = vmatprep.subr.mxu0 0.0
    %174 = vmatpush2.msra.mxu0 0.0
    %175 = vmatprep.subr.mxu0 0.0
    %176 = vmatpush2.msra.mxu0 0.0
    %177 = vmatprep.subr.mxu0 0.0
    %178 = vmatpush2.msra.mxu0 0.0
    %179 = vmatprep.subr.mxu0 0.0
    %180 = vmatpush2.msra.mxu0 0.0
    %181 = vmatprep.mubr.f32.mxu0 0.0
    %182 = vmatmul.mubr.f32.gmra.mxu0 %v97
    %v183 = vpop.f32.mrf.mxu0
    %v184 = vadd.f32 0.0, %v183
    %v185 = vpop.f32.mrf.mxu0
    %186 = vdwg.mxu0
    %v187 = vadd.f32 %v100, %v184
    %188 = vst.msk [vmem:[#allocation2] sm:$0xff] %vm26, %v187
    // Predicated region
    $region18: #{tpu_custom_call.1} parent=1 // pred_check
      %p189 = pneg %p15
    $region19: #{tpu_custom_call.1} parent=1 // pred_check_branch
      %191 = sbr.rel (%p189) target = $region21
    $region20: #{tpu_custom_call.1} parent=1 // pred_region
      %v192 = vld [vmem:[#allocation2] sm:$0xff]
      %193 = vst.msk [vmem:[#allocation3] sm:$0xff] %vm26, %v192
    $region21: #{tpu_custom_call.1} parent=1 // pred_fallthru
      _
    // Predicated region
    $region22: #{tpu_custom_call.1} parent=1 // pred_check
      _
    $region23: #{tpu_custom_call.1} parent=1 // pred_check_branch
      %195 = sbr.rel (0) target = $region25
    $region24: #{tpu_custom_call.1} parent=1 // pred_region
      %s197 = ssub.s32 128, 128
      %198 = vsyncadd [#allocation4], %s197
      %s200 = sshll.u32 [#allocation3], 4
      %s201 = int_to_ptr.vmem [resolvable:$true] %s200
      %203 = dma.vmem_to_hbm [thread:$0]  %s201, 128, %s3, [#allocation4]
    $region25: #{tpu_custom_call.1} parent=1 // pred_fallthru
      _
    // Predicated region
    $region26: #{tpu_custom_call.1} parent=1 // pred_check
      _
    $region27: #{tpu_custom_call.1} parent=1 // pred_check_branch
      %205 = sbr.rel (0) target = $region29
    $region28: #{tpu_custom_call.1} parent=1 // pred_region
      %206 = dma.done [#allocation4], 128
    $region29: #{tpu_custom_call.1} parent=1 // pred_fallthru
      _
    %207 = vsyncpa [#allocation4], 1

</llo_original>
